<compile_context>
chip_gen: v5e
topology: v5e:2x2
jax: 0.10.0
libtpu: 0.0.40
codegen_flags: <defaults>
</compile_context>

<pallas_src>
import jax
import jax.numpy as jnp
from jax import lax
from jax.experimental import pallas as pl
from jax.experimental.pallas import tpu as pltpu

LANE = 128
SUBLANE = 8                 # f32 sublane tile height
MAX_BLOCK_ROWS = 2048       # 2048*128*4B = 1 MiB per input buffer
NUM_TENSORCORES = 2         # v7x megacore split; harmless (sequential) on v5e/v6e


def _make_kernel(block_rows, blocks_per_core, rows_total, needs_mask):
    groups = block_rows // SUBLANE

    def fold(x):
        # (block_rows, 128) -> (8, 128): groups whole (8,128) f32 tiles, so the
        # reshape is layout-preserving and the reduce is plain VPU adds (one
        # per vreg) -- free filler under the DMA-bound critical path.
        return jnp.sum(x.reshape(groups, SUBLANE, LANE), axis=0)

    def kernel(p_ref, t_ref, out_ref, acc_d2, acc_p, acc_t):
        j = pl.program_id(1)

        @pl.when(j == 0)
        def _init():
            acc_d2[...] = jnp.zeros_like(acc_d2)
            acc_p[...] = jnp.zeros_like(acc_p)
            acc_t[...] = jnp.zeros_like(acc_t)

        p = p_ref[...].astype(jnp.float32)
        t = t_ref[...].astype(jnp.float32)

        if needs_mask:
            # The last block sticks out past the slab; zero its out-of-bounds
            # rows (their VMEM contents are unspecified).
            c = pl.program_id(0)
            base = (c * blocks_per_core + j) * block_rows
            row = base + lax.broadcasted_iota(jnp.int32, (block_rows, LANE), 0)
            valid = row < rows_total
            p = jnp.where(valid, p, 0.0)
            t = jnp.where(valid, t, 0.0)

        d = p - t
        acc_d2[...] += fold(d * d)
        acc_p[...] += fold(p)
        acc_t[...] += fold(t)

        @pl.when(j == pl.num_programs(1) - 1)
        def _finalize():
            # Single cross-lane reduce per quantity, once per core.
            out_ref[0, 0] = jnp.sum(acc_d2[...])
            out_ref[0, 1] = jnp.sum(acc_p[...])
            out_ref[0, 2] = jnp.sum(acc_t[...])

    return kernel


def mse_higher(y_pred, y_true, *, max_block_rows=MAX_BLOCK_ROWS):
    assert y_pred.shape == y_true.shape
    assert max_block_rows % SUBLANE == 0
    n = y_pred.size

    p = y_pred.reshape(-1)
    t = y_true.reshape(-1)

    # Lane-dense slab; rows rounded up to a multiple of 8 (f32 sublane tile).
    # For the usual aligned case this is a free reshape (no copy).
    # TODO(synk): for huge lane-unaligned inputs, in-kernel ragged-tail masking
    # of the flat array would avoid this one tail-pad copy entirely.
    rows = pl.cdiv(n, LANE)
    rows = pl.cdiv(rows, SUBLANE) * SUBLANE
    padded_n = rows * LANE
    if padded_n != n:
        p = jnp.pad(p, (0, padded_n - n))
        t = jnp.pad(t, (0, padded_n - n))
    p = p.reshape(rows, LANE)
    t = t.reshape(rows, LANE)

    block_rows = min(max_block_rows, rows)          # multiple of 8 by construction
    total_blocks = pl.cdiv(rows, block_rows)
    # Split blocks across the two TensorCores (v7x) when they divide evenly.
    if total_blocks >= NUM_TENSORCORES and total_blocks % NUM_TENSORCORES == 0:
        num_cores = NUM_TENSORCORES
    else:
        num_cores = 1
    blocks_per_core = total_blocks // num_cores
    needs_mask = (rows % block_rows) != 0

    kernel = _make_kernel(block_rows, blocks_per_core, rows, needs_mask)

    def in_map(c, j):
        return (c * blocks_per_core + j, 0)

    partials = pl.pallas_call(
        kernel,
        out_shape=jax.ShapeDtypeStruct((num_cores, 3), jnp.float32),
        grid_spec=pltpu.PrefetchScalarGridSpec(
            num_scalar_prefetch=0,
            grid=(num_cores, blocks_per_core),
            in_specs=[
                pl.BlockSpec((block_rows, LANE), in_map),
                pl.BlockSpec((block_rows, LANE), in_map),
            ],
            out_specs=pl.BlockSpec((1, 3), lambda c, j: (c, 0),
                                   memory_space=pltpu.SMEM),
            scratch_shapes=[
                pltpu.VMEM((SUBLANE, LANE), jnp.float32),   # sum((p-t)^2) partial
                pltpu.VMEM((SUBLANE, LANE), jnp.float32),   # sum(p) partial
                pltpu.VMEM((SUBLANE, LANE), jnp.float32),   # sum(t) partial
            ],
        ),
        compiler_params=pltpu.CompilerParams(
            dimension_semantics=("parallel", "arbitrary"),
        ),
    )(p, t)

    sse = jnp.sum(partials[:, 0])
    sum_p = jnp.sum(partials[:, 1])
    sum_t = jnp.sum(partials[:, 2])
    mse = sse / jnp.float32(n)
    # TODO(synk): the PyTorch module prints 'normal loss' / 'higher loss' on
    # the host inside the data-dependent branch; no clean Pallas equivalent.
    return jnp.where(sum_p > sum_t, mse, 5.0 * mse)


def _reference(y_pred, y_true):
    p = y_pred.astype(jnp.float32)
    t = y_true.astype(jnp.float32)
    mse = jnp.mean((p - t) ** 2)
    return jnp.where(jnp.sum(p) > jnp.sum(t), mse, 5.0 * mse)


def _check(y_pred, y_true, **kw):
    got = jax.block_until_ready(mse_higher(y_pred, y_true, **kw))
    ref = jax.block_until_ready(_reference(y_pred, y_true))
    assert jnp.allclose(got, ref, rtol=1e-5, atol=1e-6), (got, ref)


if __name__ == "__main__":
    key = jax.random.PRNGKey(0)
    k1, k2, k3, k4 = jax.random.split(key, 4)

    # NCHW-style regression output, small shapes (lane/sublane aligned: no pad).
    y_pred = jax.random.normal(k1, (2, 4, 16, 16), dtype=jnp.float32)
    y_true = jax.random.normal(k2, (2, 4, 16, 16), dtype=jnp.float32)
    _check(y_pred, y_true)
    _check(y_pred + 1.0, y_true)   # sum(pred) > sum(true)  -> 'normal' branch
    _check(y_pred - 1.0, y_true)   # sum(pred) <= sum(true) -> 'higher' (5x) branch

    # Multi-block + two-core split + ragged last block (forced via small blocks).
    yp = jax.random.normal(k3, (2, 4, 16, 24), dtype=jnp.float32)
    yt = jax.random.normal(k4, (2, 4, 16, 24), dtype=jnp.float32)
    _check(yp, yt, max_block_rows=16)

    # Lane-unaligned element count (tail-pad path).
    yp2 = jax.random.normal(k3, (3, 5, 7, 11), dtype=jnp.float32)
    yt2 = jax.random.normal(k4, (3, 5, 7, 11), dtype=jnp.float32)
    _check(yp2, yt2)

    print("KERNEL_OK")
</pallas_src>

<mosaic_0001>
module attributes {stable_mosaic.version = 11 : i64} {
  func.func @kernel(%arg0: i32, %arg1: i32, %arg2: memref<16x128xf32, #tpu.memory_space<vmem>>, %arg3: memref<16x128xf32, #tpu.memory_space<vmem>>, %arg4: memref<1x3xf32, #tpu.memory_space<smem>>, %arg5: memref<8x128xf32, #tpu.memory_space<vmem>>, %arg6: memref<8x128xf32, #tpu.memory_space<vmem>>, %arg7: memref<8x128xf32, #tpu.memory_space<vmem>>) attributes {dimension_semantics = [#tpu.dimension_semantics<parallel>, #tpu.dimension_semantics<arbitrary>], iteration_bounds = array<i64: 1, 1>, scalar_prefetch = 0 : i64, scratch_operands = 3 : i64, tpu.core_type = #tpu.core_type<tc>, window_params = [{transform_indices = @transform_0, window_bounds = array<i64: 16, 128>}, {transform_indices = @transform_1, window_bounds = array<i64: 16, 128>}, {transform_indices = @transform_2, window_bounds = array<i64: 1, 3>}]} {
    %c0_i32 = arith.constant 0 : i32
    %0 = arith.cmpi eq, %arg1, %c0_i32 : i32
    %1 = arith.extui %0 : i1 to i32
    %c0_i32_0 = arith.constant 0 : i32
    %2 = arith.cmpi ne, %1, %c0_i32_0 : i32
    scf.if %2 {
      %cst_20 = arith.constant 0.000000e+00 : f32
      %25 = vector.broadcast %cst_20 : f32 to vector<8x128xf32>
      %c0_21 = arith.constant 0 : index
      %c0_22 = arith.constant 0 : index
      %26 = vector.load %arg5[%c0_21, %c0_22] : memref<8x128xf32, #tpu.memory_space<vmem>>, vector<8x128xf32>
      tpu.vector_store %arg5[%c0_21, %c0_22], %25 {strides = array<i32>} : memref<8x128xf32, #tpu.memory_space<vmem>>, vector<8x128xf32>,
      %cst_23 = arith.constant 0.000000e+00 : f32
      %27 = vector.broadcast %cst_23 : f32 to vector<8x128xf32>
      %c0_24 = arith.constant 0 : index
      %c0_25 = arith.constant 0 : index
      %28 = vector.load %arg6[%c0_24, %c0_25] : memref<8x128xf32, #tpu.memory_space<vmem>>, vector<8x128xf32>
      tpu.vector_store %arg6[%c0_24, %c0_25], %27 {strides = array<i32>} : memref<8x128xf32, #tpu.memory_space<vmem>>, vector<8x128xf32>,
      %cst_26 = arith.constant 0.000000e+00 : f32
      %29 = vector.broadcast %cst_26 : f32 to vector<8x128xf32>
      %c0_27 = arith.constant 0 : index
      %c0_28 = arith.constant 0 : index
      %30 = vector.load %arg7[%c0_27, %c0_28] : memref<8x128xf32, #tpu.memory_space<vmem>>, vector<8x128xf32>
      tpu.vector_store %arg7[%c0_27, %c0_28], %29 {strides = array<i32>} : memref<8x128xf32, #tpu.memory_space<vmem>>, vector<8x128xf32>,
    } else {
    }
    %c0 = arith.constant 0 : index
    %c0_1 = arith.constant 0 : index
    %3 = vector.load %arg2[%c0, %c0_1] : memref<16x128xf32, #tpu.memory_space<vmem>>, vector<16x128xf32>
    %c0_2 = arith.constant 0 : index
    %c0_3 = arith.constant 0 : index
    %4 = vector.load %arg3[%c0_2, %c0_3] : memref<16x128xf32, #tpu.memory_space<vmem>>, vector<16x128xf32>
    %5 = arith.subf %3, %4 : vector<16x128xf32>
    %c0_4 = arith.constant 0 : index
    %c0_5 = arith.constant 0 : index
    %6 = vector.load %arg5[%c0_4, %c0_5] : memref<8x128xf32, #tpu.memory_space<vmem>>, vector<8x128xf32>
    %7 = arith.mulf %5, %5 : vector<16x128xf32>
    %8 = vector.shape_cast %7 : vector<16x128xf32> to vector<2x8x128xf32>
    %cst = arith.constant dense<0.000000e+00> : vector<8x128xf32>
    %9 = vector.multi_reduction <add>, %8, %cst [0] : vector<2x8x128xf32> to vector<8x128xf32>
    %10 = arith.addf %6, %9 : vector<8x128xf32>
    %c0_6 = arith.constant 0 : index
    %c0_7 = arith.constant 0 : index
    %11 = vector.load %arg5[%c0_6, %c0_7] : memref<8x128xf32, #tpu.memory_space<vmem>>, vector<8x128xf32>
    tpu.vector_store %arg5[%c0_6, %c0_7], %10 {strides = array<i32>} : memref<8x128xf32, #tpu.memory_space<vmem>>, vector<8x128xf32>,
    %c0_8 = arith.constant 0 : index
    %c0_9 = arith.constant 0 : index
    %12 = vector.load %arg6[%c0_8, %c0_9] : memref<8x128xf32, #tpu.memory_space<vmem>>, vector<8x128xf32>
    %13 = vector.shape_cast %3 : vector<16x128xf32> to vector<2x8x128xf32>
    %cst_10 = arith.constant dense<0.000000e+00> : vector<8x128xf32>
    %14 = vector.multi_reduction <add>, %13, %cst_10 [0] : vector<2x8x128xf32> to vector<8x128xf32>
    %15 = arith.addf %12, %14 : vector<8x128xf32>
    %c0_11 = arith.constant 0 : index
    %c0_12 = arith.constant 0 : index
    %16 = vector.load %arg6[%c0_11, %c0_12] : memref<8x128xf32, #tpu.memory_space<vmem>>, vector<8x128xf32>
    tpu.vector_store %arg6[%c0_11, %c0_12], %15 {strides = array<i32>} : memref<8x128xf32, #tpu.memory_space<vmem>>, vector<8x128xf32>,
    %c0_13 = arith.constant 0 : index
    %c0_14 = arith.constant 0 : index
    %17 = vector.load %arg7[%c0_13, %c0_14] : memref<8x128xf32, #tpu.memory_space<vmem>>, vector<8x128xf32>
    %18 = vector.shape_cast %4 : vector<16x128xf32> to vector<2x8x128xf32>
    %cst_15 = arith.constant dense<0.000000e+00> : vector<8x128xf32>
    %19 = vector.multi_reduction <add>, %18, %cst_15 [0] : vector<2x8x128xf32> to vector<8x128xf32>
    %20 = arith.addf %17, %19 : vector<8x128xf32>
    %c0_16 = arith.constant 0 : index
    %c0_17 = arith.constant 0 : index
    %21 = vector.load %arg7[%c0_16, %c0_17] : memref<8x128xf32, #tpu.memory_space<vmem>>, vector<8x128xf32>
    tpu.vector_store %arg7[%c0_16, %c0_17], %20 {strides = array<i32>} : memref<8x128xf32, #tpu.memory_space<vmem>>, vector<8x128xf32>,
    %c0_i32_18 = arith.constant 0 : i32
    %22 = arith.cmpi eq, %arg1, %c0_i32_18 : i32
    %23 = arith.extui %22 : i1 to i32
    %c0_i32_19 = arith.constant 0 : i32
    %24 = arith.cmpi ne, %23, %c0_i32_19 : i32
    scf.if %24 {
      %c0_20 = arith.constant 0 : index
      %c0_21 = arith.constant 0 : index
      %25 = vector.load %arg5[%c0_20, %c0_21] : memref<8x128xf32, #tpu.memory_space<vmem>>, vector<8x128xf32>
      %26 = vector.shape_cast %25 : vector<8x128xf32> to vector<1x8x128xf32>
      %cst_22 = arith.constant dense<0.000000e+00> : vector<1xf32>
      %27 = vector.multi_reduction <add>, %26, %cst_22 [1, 2] : vector<1x8x128xf32> to vector<1xf32>
      %28 = vector.shape_cast %27 : vector<1xf32> to vector<1x1x1xf32>
      %29 = vector.extract %28[0, 0, 0] : f32 from vector<1x1x1xf32>
      %c0_23 = arith.constant 0 : index
      %c0_24 = arith.constant 0 : index
      %30 = memref.load %arg4[%c0_23, %c0_24] : memref<1x3xf32, #tpu.memory_space<smem>>
      memref.store %29, %arg4[%c0_23, %c0_24] : memref<1x3xf32, #tpu.memory_space<smem>>
      %c0_25 = arith.constant 0 : index
      %c0_26 = arith.constant 0 : index
      %31 = vector.load %arg6[%c0_25, %c0_26] : memref<8x128xf32, #tpu.memory_space<vmem>>, vector<8x128xf32>
      %32 = vector.shape_cast %31 : vector<8x128xf32> to vector<1x8x128xf32>
      %cst_27 = arith.constant dense<0.000000e+00> : vector<1xf32>
      %33 = vector.multi_reduction <add>, %32, %cst_27 [1, 2] : vector<1x8x128xf32> to vector<1xf32>
      %34 = vector.shape_cast %33 : vector<1xf32> to vector<1x1x1xf32>
      %35 = vector.extract %34[0, 0, 0] : f32 from vector<1x1x1xf32>
      %c0_28 = arith.constant 0 : index
      %c1 = arith.constant 1 : index
      %36 = memref.load %arg4[%c0_28, %c1] : memref<1x3xf32, #tpu.memory_space<smem>>
      memref.store %35, %arg4[%c0_28, %c1] : memref<1x3xf32, #tpu.memory_space<smem>>
      %c0_29 = arith.constant 0 : index
      %c0_30 = arith.constant 0 : index
      %37 = vector.load %arg7[%c0_29, %c0_30] : memref<8x128xf32, #tpu.memory_space<vmem>>, vector<8x128xf32>
      %38 = vector.shape_cast %37 : vector<8x128xf32> to vector<1x8x128xf32>
      %cst_31 = arith.constant dense<0.000000e+00> : vector<1xf32>
      %39 = vector.multi_reduction <add>, %38, %cst_31 [1, 2] : vector<1x8x128xf32> to vector<1xf32>
      %40 = vector.shape_cast %39 : vector<1xf32> to vector<1x1x1xf32>
      %41 = vector.extract %40[0, 0, 0] : f32 from vector<1x1x1xf32>
      %c0_32 = arith.constant 0 : index
      %c2 = arith.constant 2 : index
      %42 = memref.load %arg4[%c0_32, %c2] : memref<1x3xf32, #tpu.memory_space<smem>>
      memref.store %41, %arg4[%c0_32, %c2] : memref<1x3xf32, #tpu.memory_space<smem>>
    } else {
    }
    return
  }
  func.func @transform_0(%arg0: i32, %arg1: i32) -> (i32, i32) {
    %c1_i32 = arith.constant 1 : i32
    %0 = arith.muli %arg0, %c1_i32 : i32
    %1 = arith.addi %0, %arg1 : i32
    %c0_i32 = arith.constant 0 : i32
    %c0_i32_0 = arith.constant 0 : i32
    return %1, %c0_i32 : i32, i32
  }
  func.func @transform_1(%arg0: i32, %arg1: i32) -> (i32, i32) {
    %c1_i32 = arith.constant 1 : i32
    %0 = arith.muli %arg0, %c1_i32 : i32
    %1 = arith.addi %0, %arg1 : i32
    %c0_i32 = arith.constant 0 : i32
    %c0_i32_0 = arith.constant 0 : i32
    return %1, %c0_i32 : i32, i32
  }
  func.func @transform_2(%arg0: i32, %arg1: i32) -> (i32, i32) {
    %c0_i32 = arith.constant 0 : i32
    %c0_i32_0 = arith.constant 0 : i32
    return %arg0, %c0_i32 : i32, i32
  }
}

</mosaic_0001>

<llo_original>
// kernel: tpu_custom_call.1
$region0: #{tpu_custom_call.1}
  #allocation0 [shape = 'u32[]', space=smem, size = 0x4, offset = 0x4, fixed_abs, tag = 'smem constant byte address 0x4 - core index']
  #allocation1 [shape = 'u32[72,128]{1,0:T(1,128)}', space=vmem, size = 0x9000, scoped, tag = 'internal scratch']
  #allocation2 [shape = 'f32[8,128]{1,0:T(8,128)}', space=vmem, size = 0x1000, scoped, tag = 'scratch operand']
  #allocation3 [shape = 'f32[8,128]{1,0:T(8,128)}', space=vmem, size = 0x1000, scoped, tag = 'scratch operand']
  #allocation4 [shape = 'f32[8,128]{1,0:T(8,128)}', space=vmem, size = 0x1000, scoped, tag = 'scratch operand']
  %s0 = inlined_call_operand.hbm [shape: f32[16,128], index: 0, kind: input, shape index: {}]
  %s1 = inlined_call_operand.hbm [shape: f32[16,128], index: 1, kind: input, shape index: {}]
  %s2 = inlined_call_operand.hbm [shape: f32[1,3], index: 2, kind: output, shape index: {}]
  %s3 = sld [smem:[#allocation0]]
  $region34: #{tpu_custom_call.1} parent=0
    _
  %s5 = ssub.s32 1, %s3
  %s6 = scalar_select 0, %s5, %s3
  $region1: #{tpu_custom_call.1} parent=0
    #allocation5 [shape = 'u8[8192]{0}', space=vmem, size = 0x2000, scoped, tag = 'input window, operand 0, single buffered']
    #allocation6 [shape = 's32[1]{0}', space=sflag, size = 0x4, scoped, tag = 'scoped memory for tpu_custom_call.1']
    #allocation7 [shape = 's32[1]{0}', space=sflag, size = 0x4, scoped, tag = 'scoped memory for tpu_custom_call.1']
    #allocation8 [shape = 'u8[8192]{0}', space=vmem, size = 0x2000, scoped, tag = 'input window, operand 1, single buffered']
    #allocation9 [shape = 's32[1]{0}', space=sflag, size = 0x4, scoped, tag = 'scoped memory for tpu_custom_call.1']
    #allocation10 [shape = 'u8[512]{0}', space=smem, size = 0x200, scoped, tag = 'output window, operand 0, single buffered']
    %7 = vsyncpa [#allocation6], 0
    %8 = vsyncpa [#allocation9], 0
    %9 = vsyncpa [#allocation7], 0
    // Predicated region
    $region2: #{tpu_custom_call.1} parent=1 // pred_check
      _
    $region3: #{tpu_custom_call.1} parent=1 // pred_check_branch
      %11 = sbr.rel (0) target = $region5
    $region4: #{tpu_custom_call.1} parent=1 // pred_region
      %s12 = sadd.s32 0, 0
      %s13 = smul.u32 2, %s12
      %15 = vsyncadd [#allocation6], 0
      %s16 = smul.addr %s13, 8
      %s17 = scalar_lea.hbm %s0, %s16
      %s18 = sshll.u32 %s17, 4
      %s19 = int_to_ptr.hbm [resolvable:$true] %s18
      %s20 = sshll.u32 [#allocation5], 4
      %s21 = int_to_ptr.vmem [resolvable:$true] %s20
      %26 = dma.hbm_to_vmem [thread:$0]  %s19, 256, %s21, [#allocation6], 128, 128, 8
    $region5: #{tpu_custom_call.1} parent=1 // pred_fallthru
      _
    // Predicated region
    $region6: #{tpu_custom_call.1} parent=1 // pred_check
      _
    $region7: #{tpu_custom_call.1} parent=1 // pred_check_branch
      %28 = sbr.rel (0) target = $region9
    $region8: #{tpu_custom_call.1} parent=1 // pred_region
      %s29 = sadd.s32 0, 0
      %s30 = smul.u32 2, %s29
      %32 = vsyncadd [#allocation9], 0
      %s33 = smul.addr %s30, 8
      %s34 = scalar_lea.hbm %s1, %s33
      %s35 = sshll.u32 %s34, 4
      %s36 = int_to_ptr.hbm [resolvable:$true] %s35
      %s37 = sshll.u32 [#allocation8], 4
      %s38 = int_to_ptr.vmem [resolvable:$true] %s37
      %43 = dma.hbm_to_vmem [thread:$0]  %s36, 256, %s38, [#allocation9], 128, 128, 8
    $region9: #{tpu_custom_call.1} parent=1 // pred_fallthru
      _
    // Predicated region
    $region10: #{tpu_custom_call.1} parent=1 // pred_check
      _
    $region11: #{tpu_custom_call.1} parent=1 // pred_check_branch
      %45 = sbr.rel (0) target = $region13
    $region12: #{tpu_custom_call.1} parent=1 // pred_region
      %47 = dma.done [#allocation6], 256
    $region13: #{tpu_custom_call.1} parent=1 // pred_fallthru
      _
    // Predicated region
    $region14: #{tpu_custom_call.1} parent=1 // pred_check
      _
    $region15: #{tpu_custom_call.1} parent=1 // pred_check_branch
      %49 = sbr.rel (0) target = $region17
    $region16: #{tpu_custom_call.1} parent=1 // pred_region
      %51 = dma.done [#allocation9], 256
    $region17: #{tpu_custom_call.1} parent=1 // pred_fallthru
      _
    %s52 = sadd.s32 0, 0
    %s53 = smul.u32 2, %s52
    %s54 = sadd.s32 0, 0
    %s55 = smul.u32 2, %s54
    %p56 = scmp.eq.s32.totalorder 0, 0
    // Predicated region
    $region18: #{tpu_custom_call.1} parent=1 // pred_check
      %p57 = pneg %p56
    $region19: #{tpu_custom_call.1} parent=1 // pred_check_branch
      %59 = sbr.rel (%p57) target = $region21
    $region20: #{tpu_custom_call.1} parent=1 // pred_region
      %60 = vst [vmem:[#allocation2] sm:$0xff] 0.0
      %61 = vst [vmem:[#allocation3] sm:$0xff] 0.0
      %62 = vst [vmem:[#allocation4] sm:$0xff] 0.0
    $region21: #{tpu_custom_call.1} parent=1 // pred_fallthru
      _
    %v63 = vld [vmem:[#allocation5] sm:$0xff]
    %v64 = vld [vmem:[#allocation5 + $0x8] sm:$0xff]
    %v65 = vld [vmem:[#allocation8] sm:$0xff]
    %v66 = vld [vmem:[#allocation8 + $0x8] sm:$0xff]
    %v67 = vsub.f32 %v63, %v65
    %v68 = vsub.f32 %v64, %v66
    %v69 = vld [vmem:[#allocation2] sm:$0xff]
    %v70 = vmul.f32 %v67, %v67
    %v71 = vmul.f32 %v68, %v68
    %v72 = vadd.f32 %v70, %v71
    %v73 = vadd.f32 %v69, %v72
    %74 = vst [vmem:[#allocation2] sm:$0xff] %v73
    %v75 = vld [vmem:[#allocation3] sm:$0xff]
    %v76 = vadd.f32 %v63, %v64
    %v77 = vadd.f32 %v75, %v76
    %78 = vst [vmem:[#allocation3] sm:$0xff] %v77
    %v79 = vld [vmem:[#allocation4] sm:$0xff]
    %v80 = vadd.f32 %v65, %v66
    %v81 = vadd.f32 %v79, %v80
    %82 = vst [vmem:[#allocation4] sm:$0xff] %v81
    // Predicated region
    $region22: #{tpu_custom_call.1} parent=1 // pred_check
      %p83 = pneg %p56
    $region23: #{tpu_custom_call.1} parent=1 // pred_check_branch
      %85 = sbr.rel (%p83) target = $region25
    $region24: #{tpu_custom_call.1} parent=1 // pred_region
      %v86 = vld [vmem:[#allocation2] sm:$0xff]
      %87 = vadd.xlane.f32.xlu0 %v86
      %v88 = vpop.xlane.xlu0 %87
      %v89 = vrot.slane %v88, 4
      %v90 = vadd.f32 %v88, %v89
      %v91 = vrot.slane %v90, 2
      %v92 = vadd.f32 %v90, %v91
      %v93 = vrot.slane %v92, 1
      %v94 = vadd.f32 %v92, %v93
      %s95 = vtos %v94
      %s96 = scalar_lea.smem [#allocation10], 0
      %97 = sst [smem:[%s96]] %s95
      %v98 = vld [vmem:[#allocation3] sm:$0xff]
      %99 = vadd.xlane.f32.xlu0 %v98
      %v100 = vpop.xlane.xlu0 %99
      %v101 = vrot.slane %v100, 4
      %v102 = vadd.f32 %v100, %v101
      %v103 = vrot.slane %v102, 2
      %v104 = vadd.f32 %v102, %v103
      %v105 = vrot.slane %v104, 1
      %v106 = vadd.f32 %v104, %v105
      %s107 = vtos %v106
      %s108 = scalar_lea.smem [#allocation10], 1
      %109 = sst [smem:[%s108]] %s107
      %v110 = vld [vmem:[#allocation4] sm:$0xff]
      %111 = vadd.xlane.f32.xlu0 %v110
      %v112 = vpop.xlane.xlu0 %111
      %v113 = vrot.slane %v112, 4
      %v114 = vadd.f32 %v112, %v113
      %v115 = vrot.slane %v114, 2
      %v116 = vadd.f32 %v114, %v115
      %v117 = vrot.slane %v116, 1
      %v118 = vadd.f32 %v116, %v117
      %s119 = vtos %v118
      %s120 = scalar_lea.smem [#allocation10], 2
      %121 = sst [smem:[%s120]] %s119
    $region25: #{tpu_custom_call.1} parent=1 // pred_fallthru
      _
    // Predicated region
    $region26: #{tpu_custom_call.1} parent=1 // pred_check
      _
    $region27: #{tpu_custom_call.1} parent=1 // pred_check_branch
      %123 = sbr.rel (0) target = $region29
    $region28: #{tpu_custom_call.1} parent=1 // pred_region
      %125 = vsyncadd [#allocation7], 0
      %s127 = sshll.u32 %s2, 4
      %s128 = int_to_ptr.hbm [resolvable:$true] %s127
      %130 = dma.smem_to_hbm [#allocation10], 16, %s128, [#allocation7]
    $region29: #{tpu_custom_call.1} parent=1 // pred_fallthru
      _
    // Predicated region
    $region30: #{tpu_custom_call.1} parent=1 // pred_check
      _
    $region31: #{tpu_custom_call.1} parent=1 // pred_check_branch
      %132 = sbr.rel (0) target = $region33
    $region32: #{tpu_custom_call.1} parent=1 // pred_region
      %134 = dma.done [#allocation7], 16
    $region33: #{tpu_custom_call.1} parent=1 // pred_fallthru
      _
    %135 = sfence
    %136 = vsyncpa [#allocation6], 1
    %137 = vsyncpa [#allocation9], 1
    %138 = vsyncpa [#allocation7], 1

</llo_original>
